<compile_context>
chip_gen: v6e
topology: v6e:2x2x1
jax: 0.10.0
libtpu: 0.0.40
codegen_flags: <defaults>
</compile_context>

<pallas_src>
import functools

import jax
import jax.numpy as jnp
from jax.experimental import pallas as pl
from jax.experimental.pallas import tpu as pltpu

HIDDEN = 32          # hidden width of each head (fixed by the PyTorch module)
LANES = 128          # lane-dense fused width (TPU vreg lane count)
_BATCH_ALIGN = 16    # batch-tile alignment (covers bf16 (16,128) sublane packing)


def _round_up(x, m):
    return ((x + m - 1) // m) * m


def _fused_mlp_kernel(state_ref, w1_ref, b1_ref, w2_ref, b2_ref,
                      logits_ref, value_ref, *, num_actions, compute_dtype):
    """One batch tile of the fused policy+value MLP.

    state_ref:  (TB, S)       f32 (cast to compute dtype in-kernel)
    w1_ref:     (S, 128)      compute dtype, [w1p | w1v | 0]
    b1_ref:     (1, 128)      f32,           [b1p | b1v | 0]
    w2_ref:     (128, 128)    compute dtype, block-diag [[w2p,0],[0,w2v]], rows 64.. zero
    b2_ref:     (1, 128)      f32,           [b2p | b2v | 0...]
    logits_ref: (TB, A)       f32
    value_ref:  (TB, 1)       f32
    """
    x = state_ref[...].astype(compute_dtype)
    # Fused first layer for both heads: one MXU pass, one bias+ReLU (f32 acc).
    h = jnp.dot(x, w1_ref[...], preferred_element_type=jnp.float32) + b1_ref[...]
    h = jnp.maximum(h, 0.0)
    # Fused block-diagonal second layer: lane-dense intermediate, then the
    # narrow per-head slices are stored directly (only (A+1)*4 B/row to HBM).
    out = jnp.dot(h.astype(w2_ref.dtype), w2_ref[...],
                  preferred_element_type=jnp.float32) + b2_ref[...]
    logits_ref[...] = out[:, :num_actions].astype(logits_ref.dtype)
    value_ref[...] = out[:, num_actions:num_actions + 1].astype(value_ref.dtype)


def _pack_params(params, compute_dtype):
    """Pack the four Linear layers into fused, lane-padded kernel operands."""
    H = HIDDEN
    S = params["w1p"].shape[0]
    A = params["w2p"].shape[1]
    assert A + 1 <= LANES, "no_actions + 1 must fit in one 128-lane tile"
    # Fused, lane-padded first layer: [w1p | w1v | 0] -> (S, 128).
    w1 = jnp.zeros((S, LANES), jnp.float32)
    w1 = w1.at[:, :H].set(params["w1p"])
    w1 = w1.at[:, H:2 * H].set(params["w1v"])
    b1 = jnp.zeros((1, LANES), jnp.float32)
    b1 = b1.at[:, :H].set(params["b1p"])
    b1 = b1.at[:, H:2 * H].set(params["b1v"])
    # Block-diagonal, lane-padded second layer (rows 2H..127 are zero, so the
    # zero-padded hidden lanes contribute exact zeros even in bf16).
    w2 = jnp.zeros((LANES, LANES), jnp.float32)
    w2 = w2.at[:H, :A].set(params["w2p"])
    w2 = w2.at[H:2 * H, A:A + 1].set(params["w2v"])
    b2 = jnp.zeros((1, LANES), jnp.float32)
    b2 = b2.at[:, :A].set(params["b2p"])
    b2 = b2.at[:, A:A + 1].set(params["b2v"])
    return (w1.astype(compute_dtype), b1, w2.astype(compute_dtype), b2)


def _choose_batch_tile(B, batch_tile):
    """Pick a sublane-aligned batch tile.

    Prefers (a) tiles that divide B exactly (no jnp.pad copy) and (b) at least
    two grid steps when the batch is big enough, so the "parallel" grid axis
    can shard across both TensorCores on v7x.
    """
    batch_tile = max(_round_up(batch_tile, _BATCH_ALIGN), _BATCH_ALIGN)
    if B > batch_tile:
        return batch_tile
    if B >= 2 * _BATCH_ALIGN:
        half = pl.cdiv(B, 2)
        if half % 8 == 0:
            return half                      # exactly 2 tiles, no padding
        return _round_up(half, _BATCH_ALIGN)  # 2 tiles, small tail pad
    return _round_up(B, 8)                   # tiny batch: single tile


def gae_forward(state, params, *, batch_tile=4096, compute_dtype=jnp.bfloat16):
    """state: (B, no_states) f32 -> (logits (B, no_actions) f32, value (B, 1) f32)."""
    B, S = state.shape
    A = params["w2p"].shape[1]

    w1, b1, w2, b2 = _pack_params(params, compute_dtype)

    tb = _choose_batch_tile(B, batch_tile)
    num_tiles = pl.cdiv(B, tb)
    b_pad = num_tiles * tb

    x = state
    if b_pad != B:
        # Ragged last tile only; avoided entirely when tb divides B.
        x = jnp.pad(x, ((0, b_pad - B), (0, 0)))

    kernel = functools.partial(_fused_mlp_kernel,
                               num_actions=A, compute_dtype=compute_dtype)

    logits, value = pl.pallas_call(
        kernel,
        out_shape=(jax.ShapeDtypeStruct((b_pad, A), jnp.float32),
                   jax.ShapeDtypeStruct((b_pad, 1), jnp.float32)),
        grid=(num_tiles,),
        in_specs=[
            pl.BlockSpec((tb, S), lambda i: (i, 0)),          # state: pipelined over batch
            pl.BlockSpec((S, LANES), lambda i: (0, 0)),       # weights stay VMEM-resident
            pl.BlockSpec((1, LANES), lambda i: (0, 0)),
            pl.BlockSpec((LANES, LANES), lambda i: (0, 0)),
            pl.BlockSpec((1, LANES), lambda i: (0, 0)),
        ],
        out_specs=[
            pl.BlockSpec((tb, A), lambda i: (i, 0)),          # narrow outputs: last dim
            pl.BlockSpec((tb, 1), lambda i: (i, 0)),          # equals full array dim
        ],
        compiler_params=pltpu.CompilerParams(
            dimension_semantics=("parallel",),  # batch tiles shard across TCs on v7x
        ),
    )(x, w1, b1, w2, b2)

    if b_pad != B:
        logits = logits[:B]
        value = value[:B]
    return logits, value


def init_params(key, no_states, no_actions):
    """Deterministic init mimicking nn.Linear's uniform(-1/sqrt(fan_in), 1/sqrt(fan_in))."""
    ks = jax.random.split(key, 8)

    def lin(kw, kb, fan_in, fan_out):
        bound = 1.0 / jnp.sqrt(fan_in)
        w = jax.random.uniform(kw, (fan_in, fan_out), jnp.float32, -bound, bound)
        b = jax.random.uniform(kb, (1, fan_out), jnp.float32, -bound, bound)
        return w, b

    w1p, b1p = lin(ks[0], ks[1], no_states, HIDDEN)
    w2p, b2p = lin(ks[2], ks[3], HIDDEN, no_actions)
    w1v, b1v = lin(ks[4], ks[5], no_states, HIDDEN)
    w2v, b2v = lin(ks[6], ks[7], HIDDEN, 1)
    return dict(w1p=w1p, b1p=b1p, w2p=w2p, b2p=b2p,
                w1v=w1v, b1v=b1v, w2v=w2v, b2v=b2v)


def gae_forward_ref(state, params, compute_dtype=jnp.float32):
    """Pure-JAX reference mirroring the kernel's compute-dtype handling."""
    cd = compute_dtype
    x = state.astype(cd)

    def head(w1, b1, w2, b2):
        h = jnp.dot(x, w1.astype(cd), preferred_element_type=jnp.float32) + b1
        h = jnp.maximum(h, 0.0)
        return jnp.dot(h.astype(cd), w2.astype(cd),
                       preferred_element_type=jnp.float32) + b2

    logits = head(params["w1p"], params["b1p"], params["w2p"], params["b2p"])
    value = head(params["w1v"], params["b1v"], params["w2v"], params["b2v"])
    return logits, value


if __name__ == "__main__":
    no_states, no_actions, batch = 8, 4, 8

    key = jax.random.PRNGKey(0)
    k_param, k_state = jax.random.split(key)
    params = init_params(k_param, no_states, no_actions)
    state = jax.random.normal(k_state, (batch, no_states), jnp.float32)

    # bf16 fast path (default): tight check vs a reference using identical casts.
    logits, value = gae_forward(state, params)
    jax.block_until_ready((logits, value))
    assert logits.shape == (batch, no_actions) and value.shape == (batch, 1)
    ref_l, ref_v = gae_forward_ref(state, params, jnp.bfloat16)
    assert jnp.allclose(logits, ref_l, atol=1e-4, rtol=1e-4)
    assert jnp.allclose(value, ref_v, atol=1e-4, rtol=1e-4)

    # f32 debug path: matches PyTorch f32 semantics (loose tol covers Mosaic's
    # default f32 matmul precision on the MXU).
    logits32, value32 = gae_forward(state, params, compute_dtype=jnp.float32)
    jax.block_until_ready((logits32, value32))
    ref_l32, ref_v32 = gae_forward_ref(state, params, jnp.float32)
    assert jnp.allclose(logits32, ref_l32, atol=5e-2, rtol=5e-2)
    assert jnp.allclose(value32, ref_v32, atol=5e-2, rtol=5e-2)

    # Multi-tile + ragged-batch path (exercises >=2 grid steps and tail padding).
    batch2 = 100
    state2 = jax.random.normal(jax.random.PRNGKey(1), (batch2, no_states), jnp.float32)
    l2, v2 = gae_forward(state2, params)
    jax.block_until_ready((l2, v2))
    assert l2.shape == (batch2, no_actions) and v2.shape == (batch2, 1)
    rl2, rv2 = gae_forward_ref(state2, params, jnp.bfloat16)
    assert jnp.allclose(l2, rl2, atol=1e-4, rtol=1e-4)
    assert jnp.allclose(v2, rv2, atol=1e-4, rtol=1e-4)

    print("KERNEL_OK")
</pallas_src>

<mosaic_0001>
module attributes {stable_mosaic.version = 11 : i64} {
  func.func @_fused_mlp_kernel(%arg0: i32, %arg1: memref<8x8xf32, #tpu.memory_space<vmem>>, %arg2: memref<8x128xbf16, #tpu.memory_space<vmem>>, %arg3: memref<1x128xf32, #tpu.memory_space<vmem>>, %arg4: memref<128x128xbf16, #tpu.memory_space<vmem>>, %arg5: memref<1x128xf32, #tpu.memory_space<vmem>>, %arg6: memref<8x4xf32, #tpu.memory_space<vmem>>, %arg7: memref<8x1xf32, #tpu.memory_space<vmem>>) attributes {dimension_semantics = [#tpu.dimension_semantics<parallel>], iteration_bounds = array<i64: 1>, scalar_prefetch = 0 : i64, scratch_operands = 0 : i64, tpu.core_type = #tpu.core_type<tc>, window_params = [{transform_indices = @transform_0, window_bounds = array<i64: 8, 8>}, {pipeline_mode = #tpu.pipeline_mode<synchronous>, transform_indices = @transform_1, window_bounds = array<i64: 8, 128>}, {pipeline_mode = #tpu.pipeline_mode<synchronous>, transform_indices = @transform_2, window_bounds = array<i64: 1, 128>}, {pipeline_mode = #tpu.pipeline_mode<synchronous>, transform_indices = @transform_3, window_bounds = array<i64: 128, 128>}, {pipeline_mode = #tpu.pipeline_mode<synchronous>, transform_indices = @transform_4, window_bounds = array<i64: 1, 128>}, {transform_indices = @transform_5, window_bounds = array<i64: 8, 4>}, {transform_indices = @transform_6, window_bounds = array<i64: 8, 1>}]} {
    %c0 = arith.constant 0 : index
    %c0_0 = arith.constant 0 : index
    %0 = vector.load %arg1[%c0, %c0_0] : memref<8x8xf32, #tpu.memory_space<vmem>>, vector<8x8xf32>
    %1 = arith.truncf %0 : vector<8x8xf32> to vector<8x8xbf16>
    %c0_1 = arith.constant 0 : index
    %c0_2 = arith.constant 0 : index
    %2 = vector.load %arg2[%c0_1, %c0_2] : memref<8x128xbf16, #tpu.memory_space<vmem>>, vector<8x128xbf16>
    %cst = arith.constant dense<0.000000e+00> : vector<8x128xf32>
    %3 = tpu.matmul %1, %2, %cst {dimension_numbers = #tpu.dot_dimension_numbers<[1], [0], [0], [1], [0, 0, 1, 1], [], []>} : vector<8x8xbf16>, vector<8x128xbf16>, vector<8x128xf32> -> vector<8x128xf32>
    %c0_3 = arith.constant 0 : index
    %c0_4 = arith.constant 0 : index
    %4 = vector.load %arg3[%c0_3, %c0_4] : memref<1x128xf32, #tpu.memory_space<vmem>>, vector<1x128xf32>
    %5 = vector.broadcast %4 : vector<1x128xf32> to vector<8x128xf32>
    %6 = arith.addf %3, %5 : vector<8x128xf32>
    %cst_5 = arith.constant 0.000000e+00 : f32
    %7 = vector.broadcast %cst_5 : f32 to vector<8x128xf32>
    %8 = arith.maximumf %6, %7 : vector<8x128xf32>
    %9 = arith.truncf %8 : vector<8x128xf32> to vector<8x128xbf16>
    %c0_6 = arith.constant 0 : index
    %c0_7 = arith.constant 0 : index
    %10 = vector.load %arg4[%c0_6, %c0_7] : memref<128x128xbf16, #tpu.memory_space<vmem>>, vector<128x128xbf16>
    %cst_8 = arith.constant dense<0.000000e+00> : vector<8x128xf32>
    %11 = tpu.matmul %9, %10, %cst_8 {dimension_numbers = #tpu.dot_dimension_numbers<[1], [0], [0], [1], [0, 0, 1, 1], [], []>} : vector<8x128xbf16>, vector<128x128xbf16>, vector<8x128xf32> -> vector<8x128xf32>
    %c0_9 = arith.constant 0 : index
    %c0_10 = arith.constant 0 : index
    %12 = vector.load %arg5[%c0_9, %c0_10] : memref<1x128xf32, #tpu.memory_space<vmem>>, vector<1x128xf32>
    %13 = vector.broadcast %12 : vector<1x128xf32> to vector<8x128xf32>
    %14 = arith.addf %11, %13 : vector<8x128xf32>
    %15 = vector.extract_strided_slice %14 {offsets = [0, 0], sizes = [8, 4], strides = [1, 1]} : vector<8x128xf32> to vector<8x4xf32>
    %c0_11 = arith.constant 0 : index
    %c0_12 = arith.constant 0 : index
    %16 = vector.load %arg6[%c0_11, %c0_12] : memref<8x4xf32, #tpu.memory_space<vmem>>, vector<8x4xf32>
    tpu.vector_store %arg6[%c0_11, %c0_12], %15 {strides = array<i32>} : memref<8x4xf32, #tpu.memory_space<vmem>>, vector<8x4xf32>,
    %17 = vector.extract_strided_slice %14 {offsets = [0, 4], sizes = [8, 1], strides = [1, 1]} : vector<8x128xf32> to vector<8x1xf32>
    %c0_13 = arith.constant 0 : index
    %c0_14 = arith.constant 0 : index
    %18 = vector.load %arg7[%c0_13, %c0_14] : memref<8x1xf32, #tpu.memory_space<vmem>>, vector<8x1xf32>
    tpu.vector_store %arg7[%c0_13, %c0_14], %17 {strides = array<i32>} : memref<8x1xf32, #tpu.memory_space<vmem>>, vector<8x1xf32>,
    return
  }
  func.func @transform_0(%arg0: i32) -> (i32, i32) {
    %c0_i32 = arith.constant 0 : i32
    %c0_i32_0 = arith.constant 0 : i32
    return %arg0, %c0_i32 : i32, i32
  }
  func.func @transform_1(%arg0: i32) -> (i32, i32) {
    %c0_i32 = arith.constant 0 : i32
    %c0_i32_0 = arith.constant 0 : i32
    %c0_i32_1 = arith.constant 0 : i32
    return %c0_i32, %c0_i32_0 : i32, i32
  }
  func.func @transform_2(%arg0: i32) -> (i32, i32) {
    %c0_i32 = arith.constant 0 : i32
    %c0_i32_0 = arith.constant 0 : i32
    %c0_i32_1 = arith.constant 0 : i32
    return %c0_i32, %c0_i32_0 : i32, i32
  }
  func.func @transform_3(%arg0: i32) -> (i32, i32) {
    %c0_i32 = arith.constant 0 : i32
    %c0_i32_0 = arith.constant 0 : i32
    %c0_i32_1 = arith.constant 0 : i32
    return %c0_i32, %c0_i32_0 : i32, i32
  }
  func.func @transform_4(%arg0: i32) -> (i32, i32) {
    %c0_i32 = arith.constant 0 : i32
    %c0_i32_0 = arith.constant 0 : i32
    %c0_i32_1 = arith.constant 0 : i32
    return %c0_i32, %c0_i32_0 : i32, i32
  }
  func.func @transform_5(%arg0: i32) -> (i32, i32) {
    %c0_i32 = arith.constant 0 : i32
    %c0_i32_0 = arith.constant 0 : i32
    return %arg0, %c0_i32 : i32, i32
  }
  func.func @transform_6(%arg0: i32) -> (i32, i32) {
    %c0_i32 = arith.constant 0 : i32
    %c0_i32_0 = arith.constant 0 : i32
    return %arg0, %c0_i32 : i32, i32
  }
}

</mosaic_0001>

<llo_original>
// kernel: tpu_custom_call.1
$region0: #{tpu_custom_call.1}
  #allocation0 [shape = 'u32[]', space=smem, size = 0x4, offset = 0x4, fixed_abs, tag = 'smem constant byte address 0x4 - core index']
  #allocation1 [shape = 'u32[144,128]{1,0:T(1,128)}', space=vmem, size = 0x12000, scoped, tag = 'internal scratch']
  %s0 = inlined_call_operand.hbm [shape: f32[8,8], index: 0, kind: input, shape index: {}]
  %s1 = inlined_call_operand.hbm [shape: bf16[8,128], index: 1, kind: input, shape index: {}]
  %s2 = inlined_call_operand.vmem [shape: f32[1,128], index: 2, kind: input, shape index: {}]
  %s3 = inlined_call_operand.hbm [shape: bf16[128,128], index: 3, kind: input, shape index: {}]
  %s4 = inlined_call_operand.vmem [shape: f32[1,128], index: 4, kind: input, shape index: {}]
  %s5 = inlined_call_operand.vmem [shape: f32[8,4], index: 5, kind: output, shape index: {0}]
  %s6 = inlined_call_operand.vmem [shape: f32[8,1], index: 6, kind: output, shape index: {1}]
  %7 = xla_tuple %s5, %s6
  %s8 = sld [smem:[#allocation0]]
  $region50: #{tpu_custom_call.1} parent=0
    _
  %s10 = ssub.s32 1, %s8
  %s11 = scalar_select 0, %s10, %s8
  $region1: #{tpu_custom_call.1} parent=0
    #allocation2 [shape = 'u8[4096]{0}', space=vmem, size = 0x1000, scoped, tag = 'input window, operand 0, single buffered']
    #allocation3 [shape = 's32[1]{0}', space=sflag, size = 0x4, scoped, tag = 'scoped memory for tpu_custom_call.1']
    #allocation4 [shape = 'u8[2048]{0}', space=vmem, size = 0x800, scoped, tag = 'input window, operand 1, single buffered']
    #allocation5 [shape = 's32[1]{0}', space=sflag, size = 0x4, scoped, tag = 'scoped memory for tpu_custom_call.1']
    #allocation6 [shape = 'u8[32768]{0}', space=vmem, size = 0x8000, scoped, tag = 'input window, operand 3, single buffered']
    %12 = vsyncpa [#allocation3], 0
    %13 = vsyncpa [#allocation5], 0
    // Predicated region
    $region2: #{tpu_custom_call.1} parent=1 // pred_check
      _
    $region3: #{tpu_custom_call.1} parent=1 // pred_check_branch
      %15 = sbr.rel (0) target = $region5
    $region4: #{tpu_custom_call.1} parent=1 // pred_region
      %s17 = ssub.s32 128, 128
      %18 = vsyncadd [#allocation3], %s17
      %s20 = sshll.u32 [#allocation2], 4
      %s21 = int_to_ptr.vmem [resolvable:$true] %s20
      %23 = dma.hbm_to_vmem [thread:$0]  %s0, 128, %s21, [#allocation3]
    $region5: #{tpu_custom_call.1} parent=1 // pred_fallthru
      _
    // Predicated region
    $region6: #{tpu_custom_call.1} parent=1 // pred_check
      _
    $region7: #{tpu_custom_call.1} parent=1 // pred_check_branch
      %25 = sbr.rel (0) target = $region9
    $region8: #{tpu_custom_call.1} parent=1 // pred_region
      %s27 = ssub.s32 64, 64
      %28 = vsyncadd [#allocation5], %s27
      %s30 = sshll.u32 [#allocation4], 4
      %s31 = int_to_ptr.vmem [resolvable:$true] %s30
      %33 = dma.hbm_to_vmem [thread:$0]  %s1, 64, %s31, [#allocation5]
    $region9: #{tpu_custom_call.1} parent=1 // pred_fallthru
      _
    // Predicated region
    $region10: #{tpu_custom_call.1} parent=1 // pred_check
      _
    $region11: #{tpu_custom_call.1} parent=1 // pred_check_branch
      %35 = sbr.rel (0) target = $region13
    $region12: #{tpu_custom_call.1} parent=1 // pred_region
      _
    $region13: #{tpu_custom_call.1} parent=1 // pred_fallthru
      _
    // Predicated region
    $region14: #{tpu_custom_call.1} parent=1 // pred_check
      _
    $region15: #{tpu_custom_call.1} parent=1 // pred_check_branch
      %37 = sbr.rel (0) target = $region17
    $region16: #{tpu_custom_call.1} parent=1 // pred_region
      %s39 = ssub.s32 1024, 1024
      %40 = vsyncadd [#allocation5], %s39
      %s41 = sshll.u32 [#allocation6], 4
      %s42 = int_to_ptr.vmem [resolvable:$true] %s41
      %47 = dma.hbm_to_vmem [thread:$0]  %s3, 1024, %s42, [#allocation5], 64, 64, 4
    $region17: #{tpu_custom_call.1} parent=1 // pred_fallthru
      _
    // Predicated region
    $region18: #{tpu_custom_call.1} parent=1 // pred_check
      _
    $region19: #{tpu_custom_call.1} parent=1 // pred_check_branch
      %49 = sbr.rel (0) target = $region21
    $region20: #{tpu_custom_call.1} parent=1 // pred_region
      _
    $region21: #{tpu_custom_call.1} parent=1 // pred_fallthru
      _
    // Predicated region
    $region22: #{tpu_custom_call.1} parent=1 // pred_check
      _
    $region23: #{tpu_custom_call.1} parent=1 // pred_check_branch
      %51 = sbr.rel (0) target = $region25
    $region24: #{tpu_custom_call.1} parent=1 // pred_region
      %52 = dma.done [#allocation3], 128
    $region25: #{tpu_custom_call.1} parent=1 // pred_fallthru
      _
    // Predicated region
    $region26: #{tpu_custom_call.1} parent=1 // pred_check
      _
    $region27: #{tpu_custom_call.1} parent=1 // pred_check_branch
      %54 = sbr.rel (0) target = $region29
    $region28: #{tpu_custom_call.1} parent=1 // pred_region
      %55 = dma.done [#allocation5], 64
    $region29: #{tpu_custom_call.1} parent=1 // pred_fallthru
      _
    // Predicated region
    $region30: #{tpu_custom_call.1} parent=1 // pred_check
      _
    $region31: #{tpu_custom_call.1} parent=1 // pred_check_branch
      %57 = sbr.rel (0) target = $region33
    $region32: #{tpu_custom_call.1} parent=1 // pred_region
      %58 = dma.done [#allocation5], 1024
    $region33: #{tpu_custom_call.1} parent=1 // pred_fallthru
      _
    %v60 = vld [vmem:[#allocation2] sm:$0xff]
    %v61 = vpack.c.bf16 %v60, %v60
    %v62 = vld [vmem:[#allocation4] sm:$0xf]
    %v63 = vld [vmem:[%s2] sm:$0x1]
    %v65 = vlaneseq
    %v66 = vshrl.u32 %v65, 7
    %v67 = vsub.s32 0, %v66
    %v68 = vrot.slane %v63, %v67
    %vm70 = vcmask 64512
    %v72 = vsel %vm70, %v61, 0
    %vm74 = vcmask 1043456
    %v76 = vsel %vm74, %v62, 0
    %78 = vmatprep.subr.bf16.mxu0 0
    %79 = vmatpush1.bf16.msra.mxu0 0
    %80 = vmatprep.subr.bf16.mxu0 0
    %81 = vmatpush1.bf16.msra.mxu0 0
    %82 = vmatprep.subr.bf16.mxu0 0
    %83 = vmatpush1.bf16.msra.mxu0 0
    %84 = vmatprep.subr.bf16.mxu0 0
    %85 = vmatpush1.bf16.msra.mxu0 0
    %86 = vmatprep.subr.bf16.mxu0 0
    %87 = vmatpush1.bf16.msra.mxu0 0
    %88 = vmatprep.subr.bf16.mxu0 0
    %89 = vmatpush1.bf16.msra.mxu0 0
    %90 = vmatprep.subr.bf16.mxu0 0
    %91 = vmatpush1.bf16.msra.mxu0 0
    %92 = vmatprep.subr.bf16.mxu0 0
    %93 = vmatpush1.bf16.msra.mxu0 %v76
    %94 = vmatprep.subr.bf16.mxu0 0
    %95 = vmatpush2.bf16.msra.mxu0 0
    %96 = vmatprep.subr.bf16.mxu0 0
    %97 = vmatpush2.bf16.msra.mxu0 0
    %98 = vmatprep.subr.bf16.mxu0 0
    %99 = vmatpush2.bf16.msra.mxu0 0
    %100 = vmatprep.subr.bf16.mxu0 0
    %101 = vmatpush2.bf16.msra.mxu0 0
    %102 = vmatprep.subr.bf16.mxu0 0
    %103 = vmatpush2.bf16.msra.mxu0 0
    %104 = vmatprep.subr.bf16.mxu0 0
    %105 = vmatpush2.bf16.msra.mxu0 0
    %106 = vmatprep.subr.bf16.mxu0 0
    %107 = vmatpush2.bf16.msra.mxu0 0
    %108 = vmatprep.subr.bf16.mxu0 0
    %109 = vmatpush2.bf16.msra.mxu0 0
    %110 = vmatprep.mubr.bf16.mxu0 0
    %111 = vmatmul.mubr.bf16.gmra.mxu0 %v72
    %v112 = vpop.f32.mrf.mxu0
    %v113 = vadd.f32 %v68, %v112
    %v114 = vpop.f32.mrf.mxu0
    %v115 = vpop.f32.mrf.mxu0
    %v116 = vpop.f32.mrf.mxu0
    %117 = vdwg.mxu0
    %v118 = vmax.f32 %v113, 0.0
    %v119 = vpack.c.bf16 %v118, %v118
    %v120 = vld [vmem:[#allocation6] sm:$0xf]
    %v121 = vld [vmem:[#allocation6 + $0x4] sm:$0xf]
    %v122 = vld [vmem:[#allocation6 + $0x8] sm:$0xf]
    %v123 = vld [vmem:[#allocation6 + $0xc] sm:$0xf]
    %v124 = vld [vmem:[#allocation6 + $0x10] sm:$0xf]
    %v125 = vld [vmem:[#allocation6 + $0x14] sm:$0xf]
    %v126 = vld [vmem:[#allocation6 + $0x18] sm:$0xf]
    %v127 = vld [vmem:[#allocation6 + $0x1c] sm:$0xf]
    %v128 = vld [vmem:[#allocation6 + $0x20] sm:$0xf]
    %v129 = vld [vmem:[#allocation6 + $0x24] sm:$0xf]
    %v130 = vld [vmem:[#allocation6 + $0x28] sm:$0xf]
    %v131 = vld [vmem:[#allocation6 + $0x2c] sm:$0xf]
    %v132 = vld [vmem:[#allocation6 + $0x30] sm:$0xf]
    %v133 = vld [vmem:[#allocation6 + $0x34] sm:$0xf]
    %v134 = vld [vmem:[#allocation6 + $0x38] sm:$0xf]
    %v135 = vld [vmem:[#allocation6 + $0x3c] sm:$0xf]
    %v136 = vld [vmem:[%s4] sm:$0x1]
    %v138 = vlaneseq
    %v139 = vshrl.u32 %v138, 7
    %v140 = vsub.s32 0, %v139
    %v141 = vrot.slane %v136, %v140
    %v159 = vunpack.c.l.b16 %v120
    %v160 = vunpack.c.l.b16 %v121
    %v161 = vunpack.c.l.b16 %v122
    %v162 = vunpack.c.l.b16 %v123
    %v163 = vunpack.c.l.b16 %v124
    %v164 = vunpack.c.l.b16 %v125
    %v165 = vunpack.c.l.b16 %v126
    %v166 = vunpack.c.l.b16 %v127
    %v167 = vunpack.c.l.b16 %v128
    %v168 = vunpack.c.l.b16 %v129
    %v169 = vunpack.c.l.b16 %v130
    %v170 = vunpack.c.l.b16 %v131
    %v171 = vunpack.c.l.b16 %v132
    %v172 = vunpack.c.l.b16 %v133
    %v173 = vunpack.c.l.b16 %v134
    %v174 = vunpack.c.l.b16 %v135
    %v175 = vpack.c.b16 %v160, %v159
    %v176 = vpack.c.b16 %v162, %v161
    %v177 = vpack.c.b16 %v164, %v163
    %v178 = vpack.c.b16 %v166, %v165
    %v179 = vpack.c.b16 %v168, %v167
    %v180 = vpack.c.b16 %v170, %v169
    %v181 = vpack.c.b16 %v172, %v171
    %v182 = vpack.c.b16 %v174, %v173
    %191 = vmatprep.subr.bf16.mxu0 0
    %192 = vmatpush1.bf16.msra.mxu0 %v182
    %193 = vmatprep.subr.bf16.mxu0 0
    %194 = vmatpush1.bf16.msra.mxu0 %v181
    %195 = vmatprep.subr.bf16.mxu0 0
    %196 = vmatpush1.bf16.msra.mxu0 %v180
    %197 = vmatprep.subr.bf16.mxu0 0
    %198 = vmatpush1.bf16.msra.mxu0 %v179
    %199 = vmatprep.subr.bf16.mxu0 0
    %200 = vmatpush1.bf16.msra.mxu0 %v178
    %201 = vmatprep.subr.bf16.mxu0 0
    %202 = vmatpush1.bf16.msra.mxu0 %v177
    %203 = vmatprep.subr.bf16.mxu0 0
    %204 = vmatpush1.bf16.msra.mxu0 %v176
    %205 = vmatprep.subr.bf16.mxu0 0
    %206 = vmatpush1.bf16.msra.mxu0 %v175
    %207 = vmatprep.subr.bf16.mxu0 0
    %208 = vmatpush2.bf16.msra.mxu0 0
    %209 = vmatprep.subr.bf16.mxu0 0
    %210 = vmatpush2.bf16.msra.mxu0 0
    %211 = vmatprep.subr.bf16.mxu0 0
    %212 = vmatpush2.bf16.msra.mxu0 0
    %213 = vmatprep.subr.bf16.mxu0 0
    %214 = vmatpush2.bf16.msra.mxu0 0
    %215 = vmatprep.subr.bf16.mxu0 0
    %216 = vmatpush2.bf16.msra.mxu0 0
    %217 = vmatprep.subr.bf16.mxu0 0
    %218 = vmatpush2.bf16.msra.mxu0 0
    %219 = vmatprep.subr.bf16.mxu0 0
    %220 = vmatpush2.bf16.msra.mxu0 0
    %221 = vmatprep.subr.bf16.mxu0 0
    %222 = vmatpush2.bf16.msra.mxu0 0
    %223 = vmatprep.mubr.bf16.mxu0 0
    %224 = vmatmul.mubr.bf16.gmra.mxu0 %v119
    %v225 = vpop.f32.mrf.mxu0
    %v226 = vadd.f32 %v141, %v225
    %v227 = vpop.f32.mrf.mxu0
    %v228 = vpop.f32.mrf.mxu0
    %v229 = vpop.f32.mrf.mxu0
    %230 = vdwg.mxu0
    %vm231 = vcmask 31744
    %232 = vst.msk [vmem:[%s5] sm:$0xff] %vm231, %v226
    %234 = vrot.lane.b32.xlu0 %v226, 124
    %v235 = vpop.permute.xlu0 %234
    %vm237 = vcmask 7168
    %238 = vst.msk [vmem:[%s6] sm:$0xff] %vm237, %v235
    // Predicated region
    $region34: #{tpu_custom_call.1} parent=1 // pred_check
      _
    $region35: #{tpu_custom_call.1} parent=1 // pred_check_branch
      %240 = sbr.rel (0) target = $region37
    $region36: #{tpu_custom_call.1} parent=1 // pred_region
      _
    $region37: #{tpu_custom_call.1} parent=1 // pred_fallthru
      _
    // Predicated region
    $region38: #{tpu_custom_call.1} parent=1 // pred_check
      _
    $region39: #{tpu_custom_call.1} parent=1 // pred_check_branch
      %242 = sbr.rel (0) target = $region41
    $region40: #{tpu_custom_call.1} parent=1 // pred_region
      _
    $region41: #{tpu_custom_call.1} parent=1 // pred_fallthru
      _
    // Predicated region
    $region42: #{tpu_custom_call.1} parent=1 // pred_check
      _
    $region43: #{tpu_custom_call.1} parent=1 // pred_check_branch
      %244 = sbr.rel (0) target = $region45
    $region44: #{tpu_custom_call.1} parent=1 // pred_region
      _
    $region45: #{tpu_custom_call.1} parent=1 // pred_fallthru
      _
    // Predicated region
    $region46: #{tpu_custom_call.1} parent=1 // pred_check
      _
    $region47: #{tpu_custom_call.1} parent=1 // pred_check_branch
      %246 = sbr.rel (0) target = $region49
    $region48: #{tpu_custom_call.1} parent=1 // pred_region
      _
    $region49: #{tpu_custom_call.1} parent=1 // pred_fallthru
      _
    %247 = vsyncpa [#allocation3], 1
    %248 = vsyncpa [#allocation5], 1

</llo_original>
